<compile_context>
chip_gen: v5e
topology: v5e:2x2
jax: 0.10.0
libtpu: 0.0.40
codegen_flags: <defaults>
</compile_context>

<pallas_src>
import jax
import jax.numpy as jnp
from jax.experimental import pallas as pl
from jax.experimental.pallas import tpu as pltpu

_LANES = 512        # lane-dense slab width (multiple of 128)
_BLOCK_ROWS = 512   # rows per tile (multiple of 8) -> 1 MiB f32 per operand tile


def _fq_add_kernel(scale_ref, inv_scale_ref, x_ref, y_ref, z_ref, o_ref):
    """Purely elementwise: fake-quant each tile with precomputed per-tensor
    scale / inv_scale scalars (SMEM) and sum the three results."""

    def fq(v, i):
        s = scale_ref[i]          # 127 / amax
        inv_s = inv_scale_ref[i]  # amax / 127   (0 if amax == 0)
        return jnp.clip(jnp.round(v * s), -127.0, 127.0) * inv_s

    o_ref[...] = fq(x_ref[...], 0) + fq(y_ref[...], 1) + fq(z_ref[...], 2)


def quant_multi_add(x, y, z):
    """QuantMultiAdd forward. x, y, z: float32 tensors of identical shape."""
    assert x.shape == y.shape == z.shape
    orig_shape = x.shape
    total = x.size

    # ---- per-tensor dynamic amax / scale (global reduction, outside the tiled
    # elementwise kernel so tiling cannot change numerics) -------------------
    def scales(t):
        amax = jnp.max(jnp.abs(t)).astype(jnp.float32)
        scale = jnp.float32(127.0) / jnp.maximum(amax, jnp.float32(1e-12))
        inv_scale = jnp.where(amax > 0.0, 1.0 / scale, jnp.float32(0.0))
        return scale, inv_scale

    sx, isx = scales(x)
    sy, isy = scales(y)
    sz, isz = scales(z)
    scale_vec = jnp.stack([sx, sy, sz])      # (3,) f32 -> SMEM
    inv_scale_vec = jnp.stack([isx, isy, isz])

    # ---- lane-dense 2D slab, padded so tiles satisfy the (8, 128) rule ------
    lanes = _LANES if total >= _LANES else 128
    rows = -(-total // lanes)
    block_rows = min(_BLOCK_ROWS, max(8, -(-rows // 8) * 8))
    padded_rows = -(-rows // block_rows) * block_rows
    padded_total = padded_rows * lanes

    def to_slab(t):
        flat = t.reshape(-1).astype(jnp.float32)
        if padded_total != total:
            flat = jnp.pad(flat, (0, padded_total - total))
        return flat.reshape(padded_rows, lanes)

    xs, ys, zs = to_slab(x), to_slab(y), to_slab(z)

    grid = (padded_rows // block_rows,)
    tile_spec = pl.BlockSpec((block_rows, lanes), lambda i: (i, 0))
    smem_spec = pl.BlockSpec(memory_space=pltpu.MemorySpace.SMEM)

    cost = pl.CostEstimate(
        flops=17 * padded_total,                 # ~5 VPU ops x 3 inputs + 2 adds
        transcendentals=0,
        bytes_accessed=4 * 4 * padded_total,     # 3 reads + 1 write, f32
    )

    out_slab = pl.pallas_call(
        _fq_add_kernel,
        out_shape=jax.ShapeDtypeStruct((padded_rows, lanes), jnp.float32),
        grid=grid,
        in_specs=[smem_spec, smem_spec, tile_spec, tile_spec, tile_spec],
        out_specs=tile_spec,
        compiler_params=pltpu.CompilerParams(
            dimension_semantics=("parallel",),
            vmem_limit_bytes=32 << 20,
        ),
        cost_estimate=cost,
    )(scale_vec, inv_scale_vec, xs, ys, zs)

    out_flat = out_slab.reshape(-1)
    if padded_total != total:
        out_flat = out_flat[:total]
    return out_flat.reshape(orig_shape)


def _reference(x, y, z):
    """Pure-JAX reference of the pytorch-quantization fake-quant semantics."""

    def fq(v):
        amax = jnp.max(jnp.abs(v))
        scale = 127.0 / jnp.maximum(amax, 1e-12)
        return jnp.clip(jnp.round(v * scale), -127.0, 127.0) / scale

    return fq(x) + fq(y) + fq(z)


if __name__ == "__main__":
    key = jax.random.PRNGKey(0)
    kx, ky, kz = jax.random.split(key, 3)

    shape = (2, 4, 16, 16)  # NCHW
    x = jax.random.normal(kx, shape, dtype=jnp.float32)
    y = jax.random.normal(ky, shape, dtype=jnp.float32) * 2.0
    z = jax.random.normal(kz, shape, dtype=jnp.float32) * 0.5

    out = quant_multi_add(x, y, z)
    jax.block_until_ready(out)

    ref = _reference(x, y, z)
    assert out.shape == shape
    assert jnp.allclose(out, ref, atol=1e-5, rtol=1e-5)

    print("KERNEL_OK")
</pallas_src>

<mosaic_0001>
module attributes {stable_mosaic.version = 11 : i64} {
  func.func @_fq_add_kernel(%arg0: i32, %arg1: memref<3xf32, #tpu.memory_space<smem>>, %arg2: memref<3xf32, #tpu.memory_space<smem>>, %arg3: memref<8x512xf32, #tpu.memory_space<vmem>>, %arg4: memref<8x512xf32, #tpu.memory_space<vmem>>, %arg5: memref<8x512xf32, #tpu.memory_space<vmem>>, %arg6: memref<8x512xf32, #tpu.memory_space<vmem>>) attributes {dimension_semantics = [#tpu.dimension_semantics<parallel>], iteration_bounds = array<i64: 1>, scalar_prefetch = 0 : i64, scratch_operands = 0 : i64, tpu.core_type = #tpu.core_type<tc>, window_params = [{transform_indices = @transform_0, window_bounds = array<i64: 3>}, {transform_indices = @transform_1, window_bounds = array<i64: 3>}, {transform_indices = @transform_2, window_bounds = array<i64: 8, 512>}, {transform_indices = @transform_3, window_bounds = array<i64: 8, 512>}, {transform_indices = @transform_4, window_bounds = array<i64: 8, 512>}, {transform_indices = @transform_5, window_bounds = array<i64: 8, 512>}]} {
    %c0 = arith.constant 0 : index
    %c0_0 = arith.constant 0 : index
    %0 = vector.load %arg3[%c0, %c0_0] : memref<8x512xf32, #tpu.memory_space<vmem>>, vector<8x512xf32>
    %c0_1 = arith.constant 0 : index
    %1 = memref.load %arg1[%c0_1] : memref<3xf32, #tpu.memory_space<smem>>
    %c0_2 = arith.constant 0 : index
    %2 = memref.load %arg2[%c0_2] : memref<3xf32, #tpu.memory_space<smem>>
    %3 = vector.broadcast %1 : f32 to vector<8x512xf32>
    %4 = arith.mulf %0, %3 : vector<8x512xf32>
    %5 = math.roundeven %4 : vector<8x512xf32>
    %cst = arith.constant -1.270000e+02 : f32
    %cst_3 = arith.constant 1.270000e+02 : f32
    %6 = vector.broadcast %cst : f32 to vector<8x512xf32>
    %7 = arith.maximumf %6, %5 : vector<8x512xf32>
    %8 = vector.broadcast %cst_3 : f32 to vector<8x512xf32>
    %9 = arith.minimumf %8, %7 : vector<8x512xf32>
    %10 = vector.broadcast %2 : f32 to vector<8x512xf32>
    %11 = arith.mulf %9, %10 : vector<8x512xf32>
    %c0_4 = arith.constant 0 : index
    %c0_5 = arith.constant 0 : index
    %12 = vector.load %arg4[%c0_4, %c0_5] : memref<8x512xf32, #tpu.memory_space<vmem>>, vector<8x512xf32>
    %c1 = arith.constant 1 : index
    %13 = memref.load %arg1[%c1] : memref<3xf32, #tpu.memory_space<smem>>
    %c1_6 = arith.constant 1 : index
    %14 = memref.load %arg2[%c1_6] : memref<3xf32, #tpu.memory_space<smem>>
    %15 = vector.broadcast %13 : f32 to vector<8x512xf32>
    %16 = arith.mulf %12, %15 : vector<8x512xf32>
    %17 = math.roundeven %16 : vector<8x512xf32>
    %cst_7 = arith.constant -1.270000e+02 : f32
    %cst_8 = arith.constant 1.270000e+02 : f32
    %18 = vector.broadcast %cst_7 : f32 to vector<8x512xf32>
    %19 = arith.maximumf %18, %17 : vector<8x512xf32>
    %20 = vector.broadcast %cst_8 : f32 to vector<8x512xf32>
    %21 = arith.minimumf %20, %19 : vector<8x512xf32>
    %22 = vector.broadcast %14 : f32 to vector<8x512xf32>
    %23 = arith.mulf %21, %22 : vector<8x512xf32>
    %24 = arith.addf %11, %23 : vector<8x512xf32>
    %c0_9 = arith.constant 0 : index
    %c0_10 = arith.constant 0 : index
    %25 = vector.load %arg5[%c0_9, %c0_10] : memref<8x512xf32, #tpu.memory_space<vmem>>, vector<8x512xf32>
    %c2 = arith.constant 2 : index
    %26 = memref.load %arg1[%c2] : memref<3xf32, #tpu.memory_space<smem>>
    %c2_11 = arith.constant 2 : index
    %27 = memref.load %arg2[%c2_11] : memref<3xf32, #tpu.memory_space<smem>>
    %28 = vector.broadcast %26 : f32 to vector<8x512xf32>
    %29 = arith.mulf %25, %28 : vector<8x512xf32>
    %30 = math.roundeven %29 : vector<8x512xf32>
    %cst_12 = arith.constant -1.270000e+02 : f32
    %cst_13 = arith.constant 1.270000e+02 : f32
    %31 = vector.broadcast %cst_12 : f32 to vector<8x512xf32>
    %32 = arith.maximumf %31, %30 : vector<8x512xf32>
    %33 = vector.broadcast %cst_13 : f32 to vector<8x512xf32>
    %34 = arith.minimumf %33, %32 : vector<8x512xf32>
    %35 = vector.broadcast %27 : f32 to vector<8x512xf32>
    %36 = arith.mulf %34, %35 : vector<8x512xf32>
    %37 = arith.addf %24, %36 : vector<8x512xf32>
    %c0_14 = arith.constant 0 : index
    %c0_15 = arith.constant 0 : index
    %38 = vector.load %arg6[%c0_14, %c0_15] : memref<8x512xf32, #tpu.memory_space<vmem>>, vector<8x512xf32>
    tpu.vector_store %arg6[%c0_14, %c0_15], %37 {strides = array<i32>} : memref<8x512xf32, #tpu.memory_space<vmem>>, vector<8x512xf32>,
    return
  }
  func.func @transform_0(%arg0: i32) -> i32 {
    %c0_i32 = arith.constant 0 : i32
    %c0_i32_0 = arith.constant 0 : i32
    return %c0_i32 : i32
  }
  func.func @transform_1(%arg0: i32) -> i32 {
    %c0_i32 = arith.constant 0 : i32
    %c0_i32_0 = arith.constant 0 : i32
    return %c0_i32 : i32
  }
  func.func @transform_2(%arg0: i32) -> (i32, i32) {
    %c0_i32 = arith.constant 0 : i32
    %c0_i32_0 = arith.constant 0 : i32
    return %arg0, %c0_i32 : i32, i32
  }
  func.func @transform_3(%arg0: i32) -> (i32, i32) {
    %c0_i32 = arith.constant 0 : i32
    %c0_i32_0 = arith.constant 0 : i32
    return %arg0, %c0_i32 : i32, i32
  }
  func.func @transform_4(%arg0: i32) -> (i32, i32) {
    %c0_i32 = arith.constant 0 : i32
    %c0_i32_0 = arith.constant 0 : i32
    return %arg0, %c0_i32 : i32, i32
  }
  func.func @transform_5(%arg0: i32) -> (i32, i32) {
    %c0_i32 = arith.constant 0 : i32
    %c0_i32_0 = arith.constant 0 : i32
    return %arg0, %c0_i32 : i32, i32
  }
}

</mosaic_0001>

<llo_original>
// kernel: tpu_custom_call.1
$region0: #{tpu_custom_call.1}
  #allocation0 [shape = 'u32[]', space=smem, size = 0x4, offset = 0x4, fixed_abs, tag = 'smem constant byte address 0x4 - core index']
  #allocation1 [shape = 'u32[72,128]{1,0:T(1,128)}', space=vmem, size = 0x9000, scoped, tag = 'internal scratch']
  %s0 = inlined_call_operand.hbm [shape: f32[3], index: 0, kind: input, shape index: {}]
  %s1 = inlined_call_operand.hbm [shape: f32[3], index: 1, kind: input, shape index: {}]
  %s2 = inlined_call_operand.hbm [shape: f32[8,512], index: 2, kind: input, shape index: {}]
  %s3 = inlined_call_operand.hbm [shape: f32[8,512], index: 3, kind: input, shape index: {}]
  %s4 = inlined_call_operand.hbm [shape: f32[8,512], index: 4, kind: input, shape index: {}]
  %s5 = inlined_call_operand.hbm [shape: f32[8,512], index: 5, kind: output, shape index: {}]
  %s6 = sld [smem:[#allocation0]]
  $region50: #{tpu_custom_call.1} parent=0
    _
  %s8 = ssub.s32 1, %s6
  %s9 = scalar_select 0, %s8, %s6
  $region1: #{tpu_custom_call.1} parent=0
    #allocation2 [shape = 'u8[512]{0}', space=smem, size = 0x200, scoped, tag = 'input window, operand 0, single buffered']
    #allocation3 [shape = 's32[1]{0}', space=sflag, size = 0x4, scoped, tag = 'scoped memory for tpu_custom_call.1']
    #allocation4 [shape = 's32[1]{0}', space=sflag, size = 0x4, scoped, tag = 'scoped memory for tpu_custom_call.1']
    #allocation5 [shape = 's32[1]{0}', space=sflag, size = 0x4, scoped, tag = 'scoped memory for tpu_custom_call.1']
    #allocation6 [shape = 'u8[512]{0}', space=smem, size = 0x200, scoped, tag = 'input window, operand 1, single buffered']
    #allocation7 [shape = 's32[1]{0}', space=sflag, size = 0x4, scoped, tag = 'scoped memory for tpu_custom_call.1']
    #allocation8 [shape = 'u8[16384]{0}', space=vmem, size = 0x4000, scoped, tag = 'input window, operand 2, single buffered']
    #allocation9 [shape = 'u8[16384]{0}', space=vmem, size = 0x4000, scoped, tag = 'input window, operand 3, single buffered']
    #allocation10 [shape = 's32[1]{0}', space=sflag, size = 0x4, scoped, tag = 'scoped memory for tpu_custom_call.1']
    #allocation11 [shape = 'u8[16384]{0}', space=vmem, size = 0x4000, scoped, tag = 'input window, operand 4, single buffered']
    #allocation12 [shape = 'u8[16384]{0}', space=vmem, size = 0x4000, scoped, tag = 'output window, operand 0, single buffered']
    %10 = vsyncpa [#allocation5], 0
    %11 = vsyncpa [#allocation7], 0
    %12 = vsyncpa [#allocation3], 0
    %13 = vsyncpa [#allocation10], 0
    %14 = vsyncpa [#allocation4], 0
    // Predicated region
    $region2: #{tpu_custom_call.1} parent=1 // pred_check
      _
    $region3: #{tpu_custom_call.1} parent=1 // pred_check_branch
      %16 = sbr.rel (0) target = $region5
    $region4: #{tpu_custom_call.1} parent=1 // pred_region
      %18 = vsyncadd [#allocation5], 0
      %s20 = sshll.u32 %s0, 4
      %s21 = int_to_ptr.hbm [resolvable:$true] %s20
      %23 = dma.hbm_to_smem %s21, 16, [#allocation2], [#allocation5]
    $region5: #{tpu_custom_call.1} parent=1 // pred_fallthru
      _
    // Predicated region
    $region6: #{tpu_custom_call.1} parent=1 // pred_check
      _
    $region7: #{tpu_custom_call.1} parent=1 // pred_check_branch
      %25 = sbr.rel (0) target = $region9
    $region8: #{tpu_custom_call.1} parent=1 // pred_region
      %27 = vsyncadd [#allocation7], 0
      %s29 = sshll.u32 %s1, 4
      %s30 = int_to_ptr.hbm [resolvable:$true] %s29
      %32 = dma.hbm_to_smem %s30, 16, [#allocation6], [#allocation7]
    $region9: #{tpu_custom_call.1} parent=1 // pred_fallthru
      _
    // Predicated region
    $region10: #{tpu_custom_call.1} parent=1 // pred_check
      _
    $region11: #{tpu_custom_call.1} parent=1 // pred_check_branch
      %34 = sbr.rel (0) target = $region13
    $region12: #{tpu_custom_call.1} parent=1 // pred_region
      %36 = vsyncadd [#allocation3], 0
      %s38 = sshll.u32 %s2, 4
      %s39 = int_to_ptr.hbm [resolvable:$true] %s38
      %s40 = sshll.u32 [#allocation8], 4
      %s41 = int_to_ptr.vmem [resolvable:$true] %s40
      %43 = dma.hbm_to_vmem [thread:$0]  %s39, 512, %s41, [#allocation3]
    $region13: #{tpu_custom_call.1} parent=1 // pred_fallthru
      _
    // Predicated region
    $region14: #{tpu_custom_call.1} parent=1 // pred_check
      _
    $region15: #{tpu_custom_call.1} parent=1 // pred_check_branch
      %45 = sbr.rel (0) target = $region17
    $region16: #{tpu_custom_call.1} parent=1 // pred_region
      %47 = vsyncadd [#allocation10], 0
      %s49 = sshll.u32 %s3, 4
      %s50 = int_to_ptr.hbm [resolvable:$true] %s49
      %s51 = sshll.u32 [#allocation9], 4
      %s52 = int_to_ptr.vmem [resolvable:$true] %s51
      %54 = dma.hbm_to_vmem [thread:$0]  %s50, 512, %s52, [#allocation10]
    $region17: #{tpu_custom_call.1} parent=1 // pred_fallthru
      _
    // Predicated region
    $region18: #{tpu_custom_call.1} parent=1 // pred_check
      _
    $region19: #{tpu_custom_call.1} parent=1 // pred_check_branch
      %56 = sbr.rel (0) target = $region21
    $region20: #{tpu_custom_call.1} parent=1 // pred_region
      %58 = vsyncadd [#allocation10], 0
      %s60 = sshll.u32 %s4, 4
      %s61 = int_to_ptr.hbm [resolvable:$true] %s60
      %s62 = sshll.u32 [#allocation11], 4
      %s63 = int_to_ptr.vmem [resolvable:$true] %s62
      %65 = dma.hbm_to_vmem [thread:$0]  %s61, 512, %s63, [#allocation10]
    $region21: #{tpu_custom_call.1} parent=1 // pred_fallthru
      _
    // Predicated region
    $region22: #{tpu_custom_call.1} parent=1 // pred_check
      _
    $region23: #{tpu_custom_call.1} parent=1 // pred_check_branch
      %67 = sbr.rel (0) target = $region25
    $region24: #{tpu_custom_call.1} parent=1 // pred_region
      %69 = dma.done [#allocation5], 16
    $region25: #{tpu_custom_call.1} parent=1 // pred_fallthru
      _
    // Predicated region
    $region26: #{tpu_custom_call.1} parent=1 // pred_check
      _
    $region27: #{tpu_custom_call.1} parent=1 // pred_check_branch
      %71 = sbr.rel (0) target = $region29
    $region28: #{tpu_custom_call.1} parent=1 // pred_region
      %73 = dma.done [#allocation7], 16
    $region29: #{tpu_custom_call.1} parent=1 // pred_fallthru
      _
    // Predicated region
    $region30: #{tpu_custom_call.1} parent=1 // pred_check
      _
    $region31: #{tpu_custom_call.1} parent=1 // pred_check_branch
      %75 = sbr.rel (0) target = $region33
    $region32: #{tpu_custom_call.1} parent=1 // pred_region
      %77 = dma.done [#allocation3], 512
    $region33: #{tpu_custom_call.1} parent=1 // pred_fallthru
      _
    // Predicated region
    $region34: #{tpu_custom_call.1} parent=1 // pred_check
      _
    $region35: #{tpu_custom_call.1} parent=1 // pred_check_branch
      %79 = sbr.rel (0) target = $region37
    $region36: #{tpu_custom_call.1} parent=1 // pred_region
      %81 = dma.done [#allocation10], 512
    $region37: #{tpu_custom_call.1} parent=1 // pred_fallthru
      _
    // Predicated region
    $region38: #{tpu_custom_call.1} parent=1 // pred_check
      _
    $region39: #{tpu_custom_call.1} parent=1 // pred_check_branch
      %83 = sbr.rel (0) target = $region41
    $region40: #{tpu_custom_call.1} parent=1 // pred_region
      %85 = dma.done [#allocation10], 512
    $region41: #{tpu_custom_call.1} parent=1 // pred_fallthru
      _
    %86 = sfence
    %v87 = vld [vmem:[#allocation8] sm:$0xff]
    %v88 = vld [vmem:[#allocation8 + $0x8] sm:$0xff]
    %v89 = vld [vmem:[#allocation8 + $0x10] sm:$0xff]
    %v90 = vld [vmem:[#allocation8 + $0x18] sm:$0xff]
    %s91 = sld [smem:[#allocation2]]
    %s92 = sld [smem:[#allocation6]]
    %v93 = vstv %s91
    %v94 = vmul.f32 %v87, %v93
    %v95 = vmul.f32 %v88, %v93
    %v96 = vmul.f32 %v89, %v93
    %v97 = vmul.f32 %v90, %v93
    %v98 = vround.ne.pseudo %v94
    %v99 = vround.ne.pseudo %v95
    %v100 = vround.ne.pseudo %v96
    %v101 = vround.ne.pseudo %v97
    %v102 = vmax.f32 %v98, -127.0
    %v103 = vmax.f32 %v99, -127.0
    %v104 = vmax.f32 %v100, -127.0
    %v105 = vmax.f32 %v101, -127.0
    %v106 = vmin.f32 %v102, 127.0
    %v107 = vmin.f32 %v103, 127.0
    %v108 = vmin.f32 %v104, 127.0
    %v109 = vmin.f32 %v105, 127.0
    %v110 = vstv %s92
    %v111 = vmul.f32 %v106, %v110
    %v112 = vmul.f32 %v107, %v110
    %v113 = vmul.f32 %v108, %v110
    %v114 = vmul.f32 %v109, %v110
    %v115 = vld [vmem:[#allocation9] sm:$0xff]
    %v116 = vld [vmem:[#allocation9 + $0x8] sm:$0xff]
    %v117 = vld [vmem:[#allocation9 + $0x10] sm:$0xff]
    %v118 = vld [vmem:[#allocation9 + $0x18] sm:$0xff]
    %s119 = sld [smem:[#allocation2 + $0x1]]
    %s120 = sld [smem:[#allocation6 + $0x1]]
    %v121 = vstv %s119
    %v122 = vmul.f32 %v115, %v121
    %v123 = vmul.f32 %v116, %v121
    %v124 = vmul.f32 %v117, %v121
    %v125 = vmul.f32 %v118, %v121
    %v126 = vround.ne.pseudo %v122
    %v127 = vround.ne.pseudo %v123
    %v128 = vround.ne.pseudo %v124
    %v129 = vround.ne.pseudo %v125
    %v130 = vmax.f32 %v126, -127.0
    %v131 = vmax.f32 %v127, -127.0
    %v132 = vmax.f32 %v128, -127.0
    %v133 = vmax.f32 %v129, -127.0
    %v134 = vmin.f32 %v130, 127.0
    %v135 = vmin.f32 %v131, 127.0
    %v136 = vmin.f32 %v132, 127.0
    %v137 = vmin.f32 %v133, 127.0
    %v138 = vstv %s120
    %v139 = vmul.f32 %v134, %v138
    %v140 = vmul.f32 %v135, %v138
    %v141 = vmul.f32 %v136, %v138
    %v142 = vmul.f32 %v137, %v138
    %v143 = vadd.f32 %v111, %v139
    %v144 = vadd.f32 %v112, %v140
    %v145 = vadd.f32 %v113, %v141
    %v146 = vadd.f32 %v114, %v142
    %v147 = vld [vmem:[#allocation11] sm:$0xff]
    %v148 = vld [vmem:[#allocation11 + $0x8] sm:$0xff]
    %v149 = vld [vmem:[#allocation11 + $0x10] sm:$0xff]
    %v150 = vld [vmem:[#allocation11 + $0x18] sm:$0xff]
    %s151 = sld [smem:[#allocation2 + $0x2]]
    %s152 = sld [smem:[#allocation6 + $0x2]]
    %v153 = vstv %s151
    %v154 = vmul.f32 %v147, %v153
    %v155 = vmul.f32 %v148, %v153
    %v156 = vmul.f32 %v149, %v153
    %v157 = vmul.f32 %v150, %v153
    %v158 = vround.ne.pseudo %v154
    %v159 = vround.ne.pseudo %v155
    %v160 = vround.ne.pseudo %v156
    %v161 = vround.ne.pseudo %v157
    %v162 = vmax.f32 %v158, -127.0
    %v163 = vmax.f32 %v159, -127.0
    %v164 = vmax.f32 %v160, -127.0
    %v165 = vmax.f32 %v161, -127.0
    %v166 = vmin.f32 %v162, 127.0
    %v167 = vmin.f32 %v163, 127.0
    %v168 = vmin.f32 %v164, 127.0
    %v169 = vmin.f32 %v165, 127.0
    %v170 = vstv %s152
    %v171 = vmul.f32 %v166, %v170
    %v172 = vmul.f32 %v167, %v170
    %v173 = vmul.f32 %v168, %v170
    %v174 = vmul.f32 %v169, %v170
    %v175 = vadd.f32 %v143, %v171
    %v176 = vadd.f32 %v144, %v172
    %v177 = vadd.f32 %v145, %v173
    %v178 = vadd.f32 %v146, %v174
    %179 = vst [vmem:[#allocation12] sm:$0xff] %v175
    %180 = vst [vmem:[#allocation12 + $0x8] sm:$0xff] %v176
    %181 = vst [vmem:[#allocation12 + $0x10] sm:$0xff] %v177
    %182 = vst [vmem:[#allocation12 + $0x18] sm:$0xff] %v178
    // Predicated region
    $region42: #{tpu_custom_call.1} parent=1 // pred_check
      _
    $region43: #{tpu_custom_call.1} parent=1 // pred_check_branch
      %184 = sbr.rel (0) target = $region45
    $region44: #{tpu_custom_call.1} parent=1 // pred_region
      %186 = vsyncadd [#allocation4], 0
      %s188 = sshll.u32 [#allocation12], 4
      %s189 = int_to_ptr.vmem [resolvable:$true] %s188
      %s190 = sshll.u32 %s5, 4
      %s191 = int_to_ptr.hbm [resolvable:$true] %s190
      %193 = dma.vmem_to_hbm [thread:$0]  %s189, 512, %s191, [#allocation4]
    $region45: #{tpu_custom_call.1} parent=1 // pred_fallthru
      _
    // Predicated region
    $region46: #{tpu_custom_call.1} parent=1 // pred_check
      _
    $region47: #{tpu_custom_call.1} parent=1 // pred_check_branch
      %195 = sbr.rel (0) target = $region49
    $region48: #{tpu_custom_call.1} parent=1 // pred_region
      %197 = dma.done [#allocation4], 512
    $region49: #{tpu_custom_call.1} parent=1 // pred_fallthru
      _
    %198 = vsyncpa [#allocation3], 1
    %199 = vsyncpa [#allocation10], 1
    %200 = vsyncpa [#allocation4], 1
    %201 = vsyncpa [#allocation5], 1
    %202 = vsyncpa [#allocation7], 1

</llo_original>
